<compile_context>
chip_gen: v5e
topology: v5e:2x2
jax: 0.10.0
libtpu: 0.0.40
codegen_flags: <defaults>
</compile_context>

<pallas_src>
import math

import jax
import jax.numpy as jnp
import numpy as np
from jax.experimental import pallas as pl
from jax.experimental.pallas import tpu as pltpu

OUT_LANES = 8  # packed output lanes: [action, log_p, value, entropy, 0-pad x4]


def _round_up(v, m):
    return ((v + m - 1) // m) * m


# ----------------------------------------------------------------------------
# Kernel
# ----------------------------------------------------------------------------
def make_actor_critic_kernel(state_dim, n_anchors, actor_widths, critic_widths,
                             sample, compute_dtype, out_lanes=OUT_LANES):
    """Kernel ref order: xin, [W0, b0, W1, b1, ...], out.

    xin = [x | alpha | act] along lanes (act = Gumbel noise if sample else one-hot).
    W0  = [actor layer-0 (anchor-major lanes) | critic layer-0] (shared input x).
    Wi (i>=1) = block-diag(actor layer-i anchors, critic layer-i).
    """
    A = n_anchors
    L = len(actor_widths)
    M = len(critic_widths)
    action_dim = actor_widths[-1]
    n_fused = max(L, M)

    def kernel(xin_ref, *refs):
        ws = [refs[2 * i] for i in range(n_fused)]
        bs = [refs[2 * i + 1] for i in range(n_fused)]
        out_ref = refs[2 * n_fused]

        xin = xin_ref[...]                          # (Bt, state_dim + A + action_dim)
        Bt = xin.shape[0]
        x = xin[:, :state_dim]                      # stays compute_dtype for the MXU
        alpha = xin[:, state_dim:state_dim + A].astype(jnp.float32)
        act = xin[:, state_dim + A:].astype(jnp.float32)

        def anchor_mix(y, w):
            # y: (Bt, A*w) anchor-major lane blocks; per-sample anchor combination.
            acc = alpha[:, 0:1] * y[:, :w]
            for a in range(1, A):
                acc = acc + alpha[:, a:a + 1] * y[:, a * w:(a + 1) * w]
            return acc

        # ----- fused layer 0: shared input x feeds actor anchors and critic -----
        y = jnp.dot(x, ws[0][...], preferred_element_type=jnp.float32) + bs[0][...]
        aw = A * actor_widths[0]
        h = anchor_mix(y[:, :aw], actor_widths[0])
        if L > 1:
            h = jnp.maximum(h, 0.0)                 # nn.ReLU
        v = y[:, aw:]
        if M > 1:
            v = jnp.maximum(v, 0.0)

        # ----- remaining layers: one block-diagonal matmul per layer -----
        for li in range(1, n_fused):
            has_a = li < L
            has_c = li < M
            if has_a and has_c:
                lhs = jnp.concatenate([h, v], axis=-1)
            elif has_a:
                lhs = h
            else:
                lhs = v
            y = jnp.dot(lhs.astype(compute_dtype), ws[li][...],
                        preferred_element_type=jnp.float32) + bs[li][...]
            if has_a:
                w = actor_widths[li]
                h = anchor_mix(y[:, :A * w], w)
                if li < L - 1:
                    h = jnp.maximum(h, 0.0)
            if has_c:
                off = A * actor_widths[li] if has_a else 0
                v = y[:, off:]
                if li < M - 1:
                    v = jnp.maximum(v, 0.0)

        logits = h                                   # (Bt, action_dim) f32
        value = v                                    # (Bt, 1)          f32

        # ----- Categorical(logits) : all math in f32 (v5e has no bf16 VPU/EUP) -----
        mx = jnp.max(logits, axis=-1, keepdims=True)
        shifted = logits - mx
        denom = jnp.sum(jnp.exp(shifted), axis=-1, keepdims=True)
        log_probs = shifted - jnp.log(denom)         # log_softmax
        probs = jnp.exp(log_probs)
        entropy = -jnp.sum(probs * log_probs, axis=-1, keepdims=True)

        idx_f = jax.lax.broadcasted_iota(jnp.int32, logits.shape, 1).astype(jnp.float32)
        if sample:
            # Gumbel-max: argmax(logits + g) ~ Categorical(logits).sample()
            z = logits + act
            zmax = jnp.max(z, axis=-1, keepdims=True)
            a_idx = jnp.min(jnp.where(z == zmax, idx_f, float(action_dim)),
                            axis=-1, keepdims=True)  # first maximizer
            onehot = (idx_f == a_idx).astype(jnp.float32)
        else:
            onehot = act                             # act is the one-hot action
            a_idx = jnp.sum(onehot * idx_f, axis=-1, keepdims=True)
        log_p = jnp.sum(onehot * log_probs, axis=-1, keepdims=True)

        # ----- pack [action, log_p, value, entropy] into (Bt, out_lanes) -----
        # (action index round-trips through f32: exact for action_dim < 2^24)
        lane = jax.lax.broadcasted_iota(jnp.int32, (Bt, out_lanes), 1)
        packed = jnp.where(lane == 0, a_idx, 0.0)
        packed = jnp.where(lane == 1, log_p, packed)
        packed = jnp.where(lane == 2, value, packed)
        packed = jnp.where(lane == 3, entropy, packed)
        out_ref[...] = packed

    return kernel


# ----------------------------------------------------------------------------
# One-time parameter preparation (hoisted out of the per-step forward)
# ----------------------------------------------------------------------------
def _stack_anchor(w):
    # (A, in, out) -> (in, A*out); lane-block a holds anchor a's columns.
    A, fin, fout = w.shape
    return jnp.transpose(w, (1, 0, 2)).reshape(fin, A * fout)


def _stack_anchor_bias(b):
    # (A, 1, out) -> (1, A*out)
    A, _, fout = b.shape
    return jnp.transpose(b, (1, 0, 2)).reshape(1, A * fout)


def _block_diag(wa, wc):
    ina, outa = wa.shape
    inc, outc = wc.shape
    top = jnp.concatenate([wa, jnp.zeros((ina, outc), wa.dtype)], axis=1)
    bot = jnp.concatenate([jnp.zeros((inc, outa), wc.dtype), wc], axis=1)
    return jnp.concatenate([top, bot], axis=0)


def prepare_params(params, compute_dtype=jnp.bfloat16):
    """Builds the fused/stacked weight list once (call outside the RL step loop)."""
    actor_w, actor_b = params["actor_w"], params["actor_b"]
    critic_w, critic_b = params["critic_w"], params["critic_b"]
    A = actor_w[0].shape[0]
    state_dim = actor_w[0].shape[1]
    actor_widths = [w.shape[-1] for w in actor_w]
    critic_widths = [w.shape[-1] for w in critic_w]
    L, M = len(actor_widths), len(critic_widths)
    n_fused = max(L, M)

    weights, biases = [], []
    # Layer 0: actor layer-0 anchors and critic layer-0 share input x.
    weights.append(jnp.concatenate([_stack_anchor(actor_w[0]), critic_w[0]], axis=1))
    biases.append(jnp.concatenate([_stack_anchor_bias(actor_b[0]), critic_b[0]], axis=1))
    # Layers >= 1: block-diagonal actor/critic fusion.
    for li in range(1, n_fused):
        has_a, has_c = li < L, li < M
        if has_a and has_c:
            w = _block_diag(_stack_anchor(actor_w[li]), critic_w[li])
            b = jnp.concatenate([_stack_anchor_bias(actor_b[li]), critic_b[li]], axis=1)
        elif has_a:
            w, b = _stack_anchor(actor_w[li]), _stack_anchor_bias(actor_b[li])
        else:
            w, b = critic_w[li], critic_b[li]
        weights.append(w)
        biases.append(b)

    return {
        "weights": [w.astype(compute_dtype) for w in weights],   # MXU operands
        "biases": [b.astype(jnp.float32) for b in biases],       # added in f32
        "state_dim": state_dim,
        "n_anchors": A,
        "actor_widths": actor_widths,
        "critic_widths": critic_widths,
        "compute_dtype": compute_dtype,
    }


# ----------------------------------------------------------------------------
# Forward wrapper
# ----------------------------------------------------------------------------
def actor_critic_forward(prep, x, alpha, key=None, action=None, gumbel=None):
    """Returns (action, log_p, value, entropy) like the PyTorch module.

    If `action` is None, samples from Categorical(logits) via Gumbel-max using
    `gumbel` noise (drawn from `key` if not provided).
    """
    state_dim = prep["state_dim"]
    A = prep["n_anchors"]
    actor_widths = prep["actor_widths"]
    critic_widths = prep["critic_widths"]
    action_dim = actor_widths[-1]
    compute_dtype = prep["compute_dtype"]
    B = x.shape[0]
    sample = action is None

    if sample:
        if gumbel is None:
            assert key is not None, "need `key` or `gumbel` to sample"
            u = jax.random.uniform(key, (B, action_dim), jnp.float32,
                                   minval=1e-6, maxval=1.0 - 1e-6)
            gumbel = -jnp.log(-jnp.log(u))
        act_in = gumbel
    else:
        act_in = jax.nn.one_hot(action, action_dim, dtype=jnp.float32)

    # One batch-input slab -> one input DMA per grid step (instead of three).
    xin = jnp.concatenate([x.astype(jnp.float32),
                           alpha.astype(jnp.float32),
                           act_in.astype(jnp.float32)], axis=1).astype(compute_dtype)
    d_in = state_dim + A + action_dim

    # Batch tiling: big tiles (grid-step overhead dominates this tiny network);
    # at least 2 tiles for large B so megacore parts can split the batch.
    gran = 8 if compute_dtype == jnp.float32 else 16
    if B >= 1024:
        tile_b = 512
    elif B > 256:
        tile_b = _round_up((B + 1) // 2, gran)
    else:
        tile_b = _round_up(B, gran)
    n_tiles = pl.cdiv(B, tile_b)
    Bp = n_tiles * tile_b
    if Bp != B:
        xin = jnp.pad(xin, ((0, Bp - B), (0, 0)))    # single pad of the one slab

    wb = []
    for w, b in zip(prep["weights"], prep["biases"]):
        wb += [w, b]

    kernel = make_actor_critic_kernel(state_dim, A, actor_widths, critic_widths,
                                      sample, compute_dtype)

    in_specs = [pl.BlockSpec((tile_b, d_in), lambda i: (i, 0))]
    # Weights/biases: constant index_map -> fetched once, VMEM-resident across steps.
    in_specs += [pl.BlockSpec(a.shape, lambda i: (0, 0)) for a in wb]

    packed = pl.pallas_call(
        kernel,
        out_shape=jax.ShapeDtypeStruct((Bp, OUT_LANES), jnp.float32),
        grid=(n_tiles,),
        in_specs=in_specs,
        out_specs=pl.BlockSpec((tile_b, OUT_LANES), lambda i: (i, 0)),
        compiler_params=pltpu.CompilerParams(
            dimension_semantics=("parallel",)),
    )(xin, *wb)

    packed = packed[:B]
    action_out = packed[:, 0].astype(jnp.int32) if sample else action.astype(jnp.int32)
    log_p = packed[:, 1]
    value = packed[:, 2:3]
    entropy = packed[:, 3]
    return action_out, log_p, value, entropy


# ----------------------------------------------------------------------------
# Deterministic parameter construction (PyTorch nn.Linear-style uniform init)
# ----------------------------------------------------------------------------
def init_params(key, n_anchors, state_dim, action_dim,
                actor_hidden, critic_hidden, same_init=False):
    def linear_init(k, fan_in, fan_out):
        bound = 1.0 / math.sqrt(fan_in)
        k1, k2 = jax.random.split(k)
        w = jax.random.uniform(k1, (fan_in, fan_out), jnp.float32, -bound, bound)
        b = jax.random.uniform(k2, (1, fan_out), jnp.float32, -bound, bound)
        return w, b

    params = {"actor_w": [], "actor_b": [], "critic_w": [], "critic_b": []}

    dims = [state_dim] + list(actor_hidden) + [action_dim]
    for li in range(len(dims) - 1):
        key, sub = jax.random.split(key)
        ws, bs = [], []
        w = b = None
        for a in range(n_anchors):
            if (not same_init) or a == 0:
                sub, sk = jax.random.split(sub)
                w, b = linear_init(sk, dims[li], dims[li + 1])
            ws.append(w); bs.append(b)
        params["actor_w"].append(jnp.stack(ws, axis=0))   # (A, in, out)
        params["actor_b"].append(jnp.stack(bs, axis=0))   # (A, 1, out)

    dims = [state_dim] + list(critic_hidden) + [1]
    for li in range(len(dims) - 1):
        key, sub = jax.random.split(key)
        w, b = linear_init(sub, dims[li], dims[li + 1])
        params["critic_w"].append(w)                      # (in, out)
        params["critic_b"].append(b)                      # (1, out)
    return params


# ----------------------------------------------------------------------------
# Pure-JAX reference (mirrors the PyTorch forward) for correctness checks
# ----------------------------------------------------------------------------
def reference_forward(params, x, alpha, gumbel=None, action=None):
    h = x
    L = len(params["actor_w"])
    for li in range(L):
        W, Bb = params["actor_w"][li], params["actor_b"][li]
        xs = jnp.stack([h @ W[a] + Bb[a][0] for a in range(W.shape[0])], axis=-1)
        h = (xs * alpha[:, None, :]).sum(-1)
        if li < L - 1:
            h = jnp.maximum(h, 0.0)
    logits = h
    log_probs = logits - jax.nn.logsumexp(logits, axis=-1, keepdims=True)
    probs = jnp.exp(log_probs)
    entropy = -(probs * log_probs).sum(-1)
    if action is None:
        action = jnp.argmax(logits + gumbel, axis=-1)
    log_p = jnp.take_along_axis(
        log_probs, action[:, None].astype(jnp.int32), axis=-1)[:, 0]
    v = x
    M = len(params["critic_w"])
    for li in range(M):
        v = v @ params["critic_w"][li] + params["critic_b"][li]
        if li < M - 1:
            v = jnp.maximum(v, 0.0)
    return action, log_p, v, entropy


if __name__ == "__main__":
    B, state_dim, action_dim, n_anchors = 8, 16, 4, 3
    actor_hidden, critic_hidden = [32, 32], [32, 32]

    root = jax.random.PRNGKey(0)
    k_params, k_x, k_alpha, k_gumbel = jax.random.split(root, 4)

    params = init_params(k_params, n_anchors, state_dim, action_dim,
                         actor_hidden, critic_hidden, same_init=False)

    x = jax.random.normal(k_x, (B, state_dim), jnp.float32)
    alpha_raw = jax.random.uniform(k_alpha, (B, n_anchors), jnp.float32)
    alpha = alpha_raw / alpha_raw.sum(-1, keepdims=True)    # convex anchor weights

    u = jax.random.uniform(k_gumbel, (B, action_dim), jnp.float32,
                           minval=1e-6, maxval=1.0 - 1e-6)
    gumbel = -jnp.log(-jnp.log(u))

    # ---------------- strict correctness checks: f32 compute path ----------------
    prep_f32 = prepare_params(params, compute_dtype=jnp.float32)

    # action=None path: Categorical sample (Gumbel-max)
    action, log_p, value, entropy = actor_critic_forward(
        prep_f32, x, alpha, gumbel=gumbel)
    jax.block_until_ready((action, log_p, value, entropy))

    ra, rl, rv, re = reference_forward(params, x, alpha, gumbel=gumbel)
    np.testing.assert_array_equal(np.asarray(action), np.asarray(ra))
    np.testing.assert_allclose(np.asarray(log_p), np.asarray(rl), rtol=1e-3, atol=1e-3)
    np.testing.assert_allclose(np.asarray(value), np.asarray(rv), rtol=1e-3, atol=1e-3)
    np.testing.assert_allclose(np.asarray(entropy), np.asarray(re), rtol=1e-3, atol=1e-3)

    # provided-action path
    given = jnp.array([0, 1, 2, 3, 0, 1, 2, 3], dtype=jnp.int32)
    a2, lp2, v2, e2 = actor_critic_forward(prep_f32, x, alpha, action=given)
    jax.block_until_ready((a2, lp2, v2, e2))
    _, rl2, rv2, re2 = reference_forward(params, x, alpha, action=given)
    np.testing.assert_array_equal(np.asarray(a2), np.asarray(given))
    np.testing.assert_allclose(np.asarray(lp2), np.asarray(rl2), rtol=1e-3, atol=1e-3)
    np.testing.assert_allclose(np.asarray(v2), np.asarray(rv2), rtol=1e-3, atol=1e-3)
    np.testing.assert_allclose(np.asarray(e2), np.asarray(re2), rtol=1e-3, atol=1e-3)

    assert action.shape == (B,)
    assert log_p.shape == (B,)
    assert value.shape == (B, 1)
    assert entropy.shape == (B,)

    # ---------------- bf16 fast path (halves recurring DMA bytes) ----------------
    # Elementwise/softmax math stays f32 in-kernel; compare with loose tolerance.
    prep_bf16 = prepare_params(params, compute_dtype=jnp.bfloat16)
    a3, lp3, v3, e3 = actor_critic_forward(prep_bf16, x, alpha, action=given)
    jax.block_until_ready((a3, lp3, v3, e3))
    np.testing.assert_array_equal(np.asarray(a3), np.asarray(given))
    np.testing.assert_allclose(np.asarray(lp3), np.asarray(rl2), rtol=0.1, atol=0.1)
    np.testing.assert_allclose(np.asarray(v3), np.asarray(rv2), rtol=0.1, atol=0.1)
    np.testing.assert_allclose(np.asarray(e3), np.asarray(re2), rtol=0.1, atol=0.1)

    print("KERNEL_OK")
</pallas_src>

<mosaic_0001>
module attributes {stable_mosaic.version = 11 : i64} {
  func.func @kernel(%arg0: i32, %arg1: memref<8x23xf32, #tpu.memory_space<vmem>>, %arg2: memref<16x128xf32, #tpu.memory_space<vmem>>, %arg3: memref<1x128xf32, #tpu.memory_space<vmem>>, %arg4: memref<64x128xf32, #tpu.memory_space<vmem>>, %arg5: memref<1x128xf32, #tpu.memory_space<vmem>>, %arg6: memref<64x13xf32, #tpu.memory_space<vmem>>, %arg7: memref<1x13xf32, #tpu.memory_space<vmem>>, %arg8: memref<8x8xf32, #tpu.memory_space<vmem>>) attributes {dimension_semantics = [#tpu.dimension_semantics<parallel>], iteration_bounds = array<i64: 1>, scalar_prefetch = 0 : i64, scratch_operands = 0 : i64, tpu.core_type = #tpu.core_type<tc>, window_params = [{transform_indices = @transform_0, window_bounds = array<i64: 8, 23>}, {pipeline_mode = #tpu.pipeline_mode<synchronous>, transform_indices = @transform_1, window_bounds = array<i64: 16, 128>}, {pipeline_mode = #tpu.pipeline_mode<synchronous>, transform_indices = @transform_2, window_bounds = array<i64: 1, 128>}, {pipeline_mode = #tpu.pipeline_mode<synchronous>, transform_indices = @transform_3, window_bounds = array<i64: 64, 128>}, {pipeline_mode = #tpu.pipeline_mode<synchronous>, transform_indices = @transform_4, window_bounds = array<i64: 1, 128>}, {pipeline_mode = #tpu.pipeline_mode<synchronous>, transform_indices = @transform_5, window_bounds = array<i64: 64, 13>}, {pipeline_mode = #tpu.pipeline_mode<synchronous>, transform_indices = @transform_6, window_bounds = array<i64: 1, 13>}, {transform_indices = @transform_7, window_bounds = array<i64: 8, 8>}]} {
    %c0 = arith.constant 0 : index
    %c0_0 = arith.constant 0 : index
    %0 = vector.load %arg1[%c0, %c0_0] : memref<8x23xf32, #tpu.memory_space<vmem>>, vector<8x23xf32>
    %1 = vector.extract_strided_slice %0 {offsets = [0, 0], sizes = [8, 16], strides = [1, 1]} : vector<8x23xf32> to vector<8x16xf32>
    %2 = vector.extract_strided_slice %0 {offsets = [0, 16], sizes = [8, 3], strides = [1, 1]} : vector<8x23xf32> to vector<8x3xf32>
    %3 = vector.extract_strided_slice %0 {offsets = [0, 19], sizes = [8, 4], strides = [1, 1]} : vector<8x23xf32> to vector<8x4xf32>
    %c0_1 = arith.constant 0 : index
    %c0_2 = arith.constant 0 : index
    %4 = vector.load %arg2[%c0_1, %c0_2] : memref<16x128xf32, #tpu.memory_space<vmem>>, vector<16x128xf32>
    %cst = arith.constant dense<0.000000e+00> : vector<8x128xf32>
    %5 = tpu.matmul %1, %4, %cst {dimension_numbers = #tpu.dot_dimension_numbers<[1], [0], [0], [1], [0, 0, 1, 1], [], []>} : vector<8x16xf32>, vector<16x128xf32>, vector<8x128xf32> -> vector<8x128xf32>
    %c0_3 = arith.constant 0 : index
    %c0_4 = arith.constant 0 : index
    %6 = vector.load %arg3[%c0_3, %c0_4] : memref<1x128xf32, #tpu.memory_space<vmem>>, vector<1x128xf32>
    %7 = vector.broadcast %6 : vector<1x128xf32> to vector<8x128xf32>
    %8 = arith.addf %5, %7 : vector<8x128xf32>
    %9 = vector.extract_strided_slice %8 {offsets = [0, 0], sizes = [8, 96], strides = [1, 1]} : vector<8x128xf32> to vector<8x96xf32>
    %10 = vector.extract_strided_slice %2 {offsets = [0, 0], sizes = [8, 1], strides = [1, 1]} : vector<8x3xf32> to vector<8x1xf32>
    %11 = vector.extract_strided_slice %9 {offsets = [0, 0], sizes = [8, 32], strides = [1, 1]} : vector<8x96xf32> to vector<8x32xf32>
    %12 = vector.broadcast %10 : vector<8x1xf32> to vector<8x32xf32>
    %13 = arith.mulf %12, %11 : vector<8x32xf32>
    %14 = vector.extract_strided_slice %2 {offsets = [0, 1], sizes = [8, 1], strides = [1, 1]} : vector<8x3xf32> to vector<8x1xf32>
    %15 = vector.extract_strided_slice %9 {offsets = [0, 32], sizes = [8, 32], strides = [1, 1]} : vector<8x96xf32> to vector<8x32xf32>
    %16 = vector.broadcast %14 : vector<8x1xf32> to vector<8x32xf32>
    %17 = arith.mulf %16, %15 : vector<8x32xf32>
    %18 = arith.addf %13, %17 : vector<8x32xf32>
    %19 = vector.extract_strided_slice %2 {offsets = [0, 2], sizes = [8, 1], strides = [1, 1]} : vector<8x3xf32> to vector<8x1xf32>
    %20 = vector.extract_strided_slice %9 {offsets = [0, 64], sizes = [8, 32], strides = [1, 1]} : vector<8x96xf32> to vector<8x32xf32>
    %21 = vector.broadcast %19 : vector<8x1xf32> to vector<8x32xf32>
    %22 = arith.mulf %21, %20 : vector<8x32xf32>
    %23 = arith.addf %18, %22 : vector<8x32xf32>
    %cst_5 = arith.constant 0.000000e+00 : f32
    %24 = vector.broadcast %cst_5 : f32 to vector<8x32xf32>
    %25 = arith.maximumf %23, %24 : vector<8x32xf32>
    %26 = vector.extract_strided_slice %8 {offsets = [0, 96], sizes = [8, 32], strides = [1, 1]} : vector<8x128xf32> to vector<8x32xf32>
    %cst_6 = arith.constant 0.000000e+00 : f32
    %27 = vector.broadcast %cst_6 : f32 to vector<8x32xf32>
    %28 = arith.maximumf %26, %27 : vector<8x32xf32>
    %29 = tpu.concatenate %25, %28 in 1 : vector<8x32xf32>, vector<8x32xf32> -> vector<8x64xf32>
    %c0_7 = arith.constant 0 : index
    %c0_8 = arith.constant 0 : index
    %30 = vector.load %arg4[%c0_7, %c0_8] : memref<64x128xf32, #tpu.memory_space<vmem>>, vector<64x128xf32>
    %cst_9 = arith.constant dense<0.000000e+00> : vector<8x128xf32>
    %31 = tpu.matmul %29, %30, %cst_9 {dimension_numbers = #tpu.dot_dimension_numbers<[1], [0], [0], [1], [0, 0, 1, 1], [], []>} : vector<8x64xf32>, vector<64x128xf32>, vector<8x128xf32> -> vector<8x128xf32>
    %c0_10 = arith.constant 0 : index
    %c0_11 = arith.constant 0 : index
    %32 = vector.load %arg5[%c0_10, %c0_11] : memref<1x128xf32, #tpu.memory_space<vmem>>, vector<1x128xf32>
    %33 = vector.broadcast %32 : vector<1x128xf32> to vector<8x128xf32>
    %34 = arith.addf %31, %33 : vector<8x128xf32>
    %35 = vector.extract_strided_slice %34 {offsets = [0, 0], sizes = [8, 96], strides = [1, 1]} : vector<8x128xf32> to vector<8x96xf32>
    %36 = vector.extract_strided_slice %2 {offsets = [0, 0], sizes = [8, 1], strides = [1, 1]} : vector<8x3xf32> to vector<8x1xf32>
    %37 = vector.extract_strided_slice %35 {offsets = [0, 0], sizes = [8, 32], strides = [1, 1]} : vector<8x96xf32> to vector<8x32xf32>
    %38 = vector.broadcast %36 : vector<8x1xf32> to vector<8x32xf32>
    %39 = arith.mulf %38, %37 : vector<8x32xf32>
    %40 = vector.extract_strided_slice %2 {offsets = [0, 1], sizes = [8, 1], strides = [1, 1]} : vector<8x3xf32> to vector<8x1xf32>
    %41 = vector.extract_strided_slice %35 {offsets = [0, 32], sizes = [8, 32], strides = [1, 1]} : vector<8x96xf32> to vector<8x32xf32>
    %42 = vector.broadcast %40 : vector<8x1xf32> to vector<8x32xf32>
    %43 = arith.mulf %42, %41 : vector<8x32xf32>
    %44 = arith.addf %39, %43 : vector<8x32xf32>
    %45 = vector.extract_strided_slice %2 {offsets = [0, 2], sizes = [8, 1], strides = [1, 1]} : vector<8x3xf32> to vector<8x1xf32>
    %46 = vector.extract_strided_slice %35 {offsets = [0, 64], sizes = [8, 32], strides = [1, 1]} : vector<8x96xf32> to vector<8x32xf32>
    %47 = vector.broadcast %45 : vector<8x1xf32> to vector<8x32xf32>
    %48 = arith.mulf %47, %46 : vector<8x32xf32>
    %49 = arith.addf %44, %48 : vector<8x32xf32>
    %cst_12 = arith.constant 0.000000e+00 : f32
    %50 = vector.broadcast %cst_12 : f32 to vector<8x32xf32>
    %51 = arith.maximumf %49, %50 : vector<8x32xf32>
    %52 = vector.extract_strided_slice %34 {offsets = [0, 96], sizes = [8, 32], strides = [1, 1]} : vector<8x128xf32> to vector<8x32xf32>
    %cst_13 = arith.constant 0.000000e+00 : f32
    %53 = vector.broadcast %cst_13 : f32 to vector<8x32xf32>
    %54 = arith.maximumf %52, %53 : vector<8x32xf32>
    %55 = tpu.concatenate %51, %54 in 1 : vector<8x32xf32>, vector<8x32xf32> -> vector<8x64xf32>
    %c0_14 = arith.constant 0 : index
    %c0_15 = arith.constant 0 : index
    %56 = vector.load %arg6[%c0_14, %c0_15] : memref<64x13xf32, #tpu.memory_space<vmem>>, vector<64x13xf32>
    %cst_16 = arith.constant dense<0.000000e+00> : vector<8x13xf32>
    %57 = tpu.matmul %55, %56, %cst_16 {dimension_numbers = #tpu.dot_dimension_numbers<[1], [0], [0], [1], [0, 0, 1, 1], [], []>} : vector<8x64xf32>, vector<64x13xf32>, vector<8x13xf32> -> vector<8x13xf32>
    %c0_17 = arith.constant 0 : index
    %c0_18 = arith.constant 0 : index
    %58 = vector.load %arg7[%c0_17, %c0_18] : memref<1x13xf32, #tpu.memory_space<vmem>>, vector<1x13xf32>
    %59 = vector.broadcast %58 : vector<1x13xf32> to vector<8x13xf32>
    %60 = arith.addf %57, %59 : vector<8x13xf32>
    %61 = vector.extract_strided_slice %60 {offsets = [0, 0], sizes = [8, 12], strides = [1, 1]} : vector<8x13xf32> to vector<8x12xf32>
    %62 = vector.extract_strided_slice %2 {offsets = [0, 0], sizes = [8, 1], strides = [1, 1]} : vector<8x3xf32> to vector<8x1xf32>
    %63 = vector.extract_strided_slice %61 {offsets = [0, 0], sizes = [8, 4], strides = [1, 1]} : vector<8x12xf32> to vector<8x4xf32>
    %64 = vector.broadcast %62 : vector<8x1xf32> to vector<8x4xf32>
    %65 = arith.mulf %64, %63 : vector<8x4xf32>
    %66 = vector.extract_strided_slice %2 {offsets = [0, 1], sizes = [8, 1], strides = [1, 1]} : vector<8x3xf32> to vector<8x1xf32>
    %67 = vector.extract_strided_slice %61 {offsets = [0, 4], sizes = [8, 4], strides = [1, 1]} : vector<8x12xf32> to vector<8x4xf32>
    %68 = vector.broadcast %66 : vector<8x1xf32> to vector<8x4xf32>
    %69 = arith.mulf %68, %67 : vector<8x4xf32>
    %70 = arith.addf %65, %69 : vector<8x4xf32>
    %71 = vector.extract_strided_slice %2 {offsets = [0, 2], sizes = [8, 1], strides = [1, 1]} : vector<8x3xf32> to vector<8x1xf32>
    %72 = vector.extract_strided_slice %61 {offsets = [0, 8], sizes = [8, 4], strides = [1, 1]} : vector<8x12xf32> to vector<8x4xf32>
    %73 = vector.broadcast %71 : vector<8x1xf32> to vector<8x4xf32>
    %74 = arith.mulf %73, %72 : vector<8x4xf32>
    %75 = arith.addf %70, %74 : vector<8x4xf32>
    %76 = vector.extract_strided_slice %60 {offsets = [0, 12], sizes = [8, 1], strides = [1, 1]} : vector<8x13xf32> to vector<8x1xf32>
    %cst_19 = arith.constant dense<0xFF800000> : vector<8xf32>
    %77 = vector.multi_reduction <maximumf>, %75, %cst_19 [1] : vector<8x4xf32> to vector<8xf32>
    %78 = vector.shape_cast %77 : vector<8xf32> to vector<8x1xf32>
    %79 = vector.broadcast %78 : vector<8x1xf32> to vector<8x4xf32>
    %80 = arith.subf %75, %79 : vector<8x4xf32>
    %81 = math.exp %80 : vector<8x4xf32>
    %cst_20 = arith.constant dense<0.000000e+00> : vector<8xf32>
    %82 = vector.multi_reduction <add>, %81, %cst_20 [1] : vector<8x4xf32> to vector<8xf32>
    %83 = vector.shape_cast %82 : vector<8xf32> to vector<8x1xf32>
    %84 = math.log %83 : vector<8x1xf32>
    %85 = vector.broadcast %84 : vector<8x1xf32> to vector<8x4xf32>
    %86 = arith.subf %80, %85 : vector<8x4xf32>
    %87 = math.exp %86 : vector<8x4xf32>
    %88 = arith.mulf %87, %86 : vector<8x4xf32>
    %cst_21 = arith.constant dense<0.000000e+00> : vector<8xf32>
    %89 = vector.multi_reduction <add>, %88, %cst_21 [1] : vector<8x4xf32> to vector<8xf32>
    %90 = vector.shape_cast %89 : vector<8xf32> to vector<8x1xf32>
    %cst_22 = arith.constant 0.000000e+00 : f32
    %91 = vector.broadcast %cst_22 : f32 to vector<8x1xf32>
    %92 = arith.subf %91, %90 : vector<8x1xf32>
    %93 = tpu.iota {dimensions = array<i32: 1>} : vector<8x4xi32>
    %94 = arith.sitofp %93 : vector<8x4xi32> to vector<8x4xf32>
    %95 = arith.addf %75, %3 : vector<8x4xf32>
    %cst_23 = arith.constant dense<0xFF800000> : vector<8xf32>
    %96 = vector.multi_reduction <maximumf>, %95, %cst_23 [1] : vector<8x4xf32> to vector<8xf32>
    %97 = vector.shape_cast %96 : vector<8xf32> to vector<8x1xf32>
    %98 = vector.broadcast %97 : vector<8x1xf32> to vector<8x4xf32>
    %99 = arith.cmpf oeq, %95, %98 : vector<8x4xf32>
    %cst_24 = arith.constant 4.000000e+00 : f32
    %100 = vector.broadcast %cst_24 : f32 to vector<8x4xf32>
    %101 = arith.select %99, %94, %100 : vector<8x4xi1>, vector<8x4xf32>
    %cst_25 = arith.constant dense<0x7F800000> : vector<8xf32>
    %102 = vector.multi_reduction <minimumf>, %101, %cst_25 [1] : vector<8x4xf32> to vector<8xf32>
    %103 = vector.shape_cast %102 : vector<8xf32> to vector<8x1xf32>
    %104 = vector.broadcast %103 : vector<8x1xf32> to vector<8x4xf32>
    %105 = arith.cmpf oeq, %94, %104 : vector<8x4xf32>
    %106 = arith.extui %105 : vector<8x4xi1> to vector<8x4xi32>
    %107 = arith.sitofp %106 : vector<8x4xi32> to vector<8x4xf32>
    %108 = arith.mulf %107, %86 : vector<8x4xf32>
    %cst_26 = arith.constant dense<0.000000e+00> : vector<8xf32>
    %109 = vector.multi_reduction <add>, %108, %cst_26 [1] : vector<8x4xf32> to vector<8xf32>
    %110 = vector.shape_cast %109 : vector<8xf32> to vector<8x1xf32>
    %111 = tpu.iota {dimensions = array<i32: 1>} : vector<8x8xi32>
    %c0_i32 = arith.constant 0 : i32
    %112 = vector.broadcast %c0_i32 : i32 to vector<8x8xi32>
    %113 = arith.cmpi eq, %111, %112 : vector<8x8xi32>
    %cst_27 = arith.constant 0.000000e+00 : f32
    %114 = vector.shape_cast %103 : vector<8x1xf32> to vector<8x1xf32>
    %115 = vector.broadcast %114 : vector<8x1xf32> to vector<8x8xf32>
    %116 = vector.broadcast %cst_27 : f32 to vector<8x8xf32>
    %117 = arith.select %113, %115, %116 : vector<8x8xi1>, vector<8x8xf32>
    %c1_i32 = arith.constant 1 : i32
    %118 = vector.broadcast %c1_i32 : i32 to vector<8x8xi32>
    %119 = arith.cmpi eq, %111, %118 : vector<8x8xi32>
    %120 = vector.shape_cast %110 : vector<8x1xf32> to vector<8x1xf32>
    %121 = vector.broadcast %120 : vector<8x1xf32> to vector<8x8xf32>
    %122 = arith.select %119, %121, %117 : vector<8x8xi1>, vector<8x8xf32>
    %c2_i32 = arith.constant 2 : i32
    %123 = vector.broadcast %c2_i32 : i32 to vector<8x8xi32>
    %124 = arith.cmpi eq, %111, %123 : vector<8x8xi32>
    %125 = vector.shape_cast %76 : vector<8x1xf32> to vector<8x1xf32>
    %126 = vector.broadcast %125 : vector<8x1xf32> to vector<8x8xf32>
    %127 = arith.select %124, %126, %122 : vector<8x8xi1>, vector<8x8xf32>
    %c3_i32 = arith.constant 3 : i32
    %128 = vector.broadcast %c3_i32 : i32 to vector<8x8xi32>
    %129 = arith.cmpi eq, %111, %128 : vector<8x8xi32>
    %130 = vector.shape_cast %92 : vector<8x1xf32> to vector<8x1xf32>
    %131 = vector.broadcast %130 : vector<8x1xf32> to vector<8x8xf32>
    %132 = arith.select %129, %131, %127 : vector<8x8xi1>, vector<8x8xf32>
    %c0_28 = arith.constant 0 : index
    %c0_29 = arith.constant 0 : index
    %133 = vector.load %arg8[%c0_28, %c0_29] : memref<8x8xf32, #tpu.memory_space<vmem>>, vector<8x8xf32>
    tpu.vector_store %arg8[%c0_28, %c0_29], %132 {strides = array<i32>} : memref<8x8xf32, #tpu.memory_space<vmem>>, vector<8x8xf32>,
    return
  }
  func.func @transform_0(%arg0: i32) -> (i32, i32) {
    %c0_i32 = arith.constant 0 : i32
    %c0_i32_0 = arith.constant 0 : i32
    return %arg0, %c0_i32 : i32, i32
  }
  func.func @transform_1(%arg0: i32) -> (i32, i32) {
    %c0_i32 = arith.constant 0 : i32
    %c0_i32_0 = arith.constant 0 : i32
    %c0_i32_1 = arith.constant 0 : i32
    return %c0_i32, %c0_i32_0 : i32, i32
  }
  func.func @transform_2(%arg0: i32) -> (i32, i32) {
    %c0_i32 = arith.constant 0 : i32
    %c0_i32_0 = arith.constant 0 : i32
    %c0_i32_1 = arith.constant 0 : i32
    return %c0_i32, %c0_i32_0 : i32, i32
  }
  func.func @transform_3(%arg0: i32) -> (i32, i32) {
    %c0_i32 = arith.constant 0 : i32
    %c0_i32_0 = arith.constant 0 : i32
    %c0_i32_1 = arith.constant 0 : i32
    return %c0_i32, %c0_i32_0 : i32, i32
  }
  func.func @transform_4(%arg0: i32) -> (i32, i32) {
    %c0_i32 = arith.constant 0 : i32
    %c0_i32_0 = arith.constant 0 : i32
    %c0_i32_1 = arith.constant 0 : i32
    return %c0_i32, %c0_i32_0 : i32, i32
  }
  func.func @transform_5(%arg0: i32) -> (i32, i32) {
    %c0_i32 = arith.constant 0 : i32
    %c0_i32_0 = arith.constant 0 : i32
    %c0_i32_1 = arith.constant 0 : i32
    return %c0_i32, %c0_i32_0 : i32, i32
  }
  func.func @transform_6(%arg0: i32) -> (i32, i32) {
    %c0_i32 = arith.constant 0 : i32
    %c0_i32_0 = arith.constant 0 : i32
    %c0_i32_1 = arith.constant 0 : i32
    return %c0_i32, %c0_i32_0 : i32, i32
  }
  func.func @transform_7(%arg0: i32) -> (i32, i32) {
    %c0_i32 = arith.constant 0 : i32
    %c0_i32_0 = arith.constant 0 : i32
    return %arg0, %c0_i32 : i32, i32
  }
}

</mosaic_0001>

<llo_original>
// kernel: tpu_custom_call.1
$region0: #{tpu_custom_call.1}
  #allocation0 [shape = 'u32[]', space=smem, size = 0x4, offset = 0x4, fixed_abs, tag = 'smem constant byte address 0x4 - core index']
  #allocation1 [shape = 'u32[72,128]{1,0:T(1,128)}', space=vmem, size = 0x9000, scoped, tag = 'internal scratch']
  %s0 = inlined_call_operand.hbm [shape: f32[8,23], index: 0, kind: input, shape index: {}]
  %s1 = inlined_call_operand.vmem [shape: f32[16,128], index: 1, kind: input, shape index: {}]
  %s2 = inlined_call_operand.vmem [shape: f32[1,128], index: 2, kind: input, shape index: {}]
  %s3 = inlined_call_operand.vmem [shape: f32[64,128], index: 3, kind: input, shape index: {}]
  %s4 = inlined_call_operand.vmem [shape: f32[1,128], index: 4, kind: input, shape index: {}]
  %s5 = inlined_call_operand.vmem [shape: f32[64,13], index: 5, kind: input, shape index: {}]
  %s6 = inlined_call_operand.vmem [shape: f32[1,13], index: 6, kind: input, shape index: {}]
  %s7 = inlined_call_operand.hbm [shape: f32[8,8], index: 7, kind: output, shape index: {}]
  %s8 = sld [smem:[#allocation0]]
  $region42: #{tpu_custom_call.1} parent=0
    _
  %s10 = ssub.s32 1, %s8
  %s11 = scalar_select 0, %s10, %s8
  $region1: #{tpu_custom_call.1} parent=0
    #allocation2 [shape = 'u8[4096]{0}', space=vmem, size = 0x1000, scoped, tag = 'input window, operand 0, single buffered']
    #allocation3 [shape = 's32[1]{0}', space=sflag, size = 0x4, scoped, tag = 'scoped memory for tpu_custom_call.1']
    #allocation4 [shape = 's32[1]{0}', space=sflag, size = 0x4, scoped, tag = 'scoped memory for tpu_custom_call.1']
    #allocation5 [shape = 'u8[4096]{0}', space=vmem, size = 0x1000, scoped, tag = 'output window, operand 0, single buffered']
    %12 = vsyncpa [#allocation3], 0
    %13 = vsyncpa [#allocation4], 0
    // Predicated region
    $region2: #{tpu_custom_call.1} parent=1 // pred_check
      _
    $region3: #{tpu_custom_call.1} parent=1 // pred_check_branch
      %15 = sbr.rel (0) target = $region5
    $region4: #{tpu_custom_call.1} parent=1 // pred_region
      %17 = vsyncadd [#allocation3], 0
      %s19 = sshll.u32 %s0, 4
      %s20 = int_to_ptr.hbm [resolvable:$true] %s19
      %s21 = sshll.u32 [#allocation2], 4
      %s22 = int_to_ptr.vmem [resolvable:$true] %s21
      %24 = dma.hbm_to_vmem [thread:$0]  %s20, 128, %s22, [#allocation3]
    $region5: #{tpu_custom_call.1} parent=1 // pred_fallthru
      _
    // Predicated region
    $region6: #{tpu_custom_call.1} parent=1 // pred_check
      _
    $region7: #{tpu_custom_call.1} parent=1 // pred_check_branch
      %26 = sbr.rel (0) target = $region9
    $region8: #{tpu_custom_call.1} parent=1 // pred_region
      _
    $region9: #{tpu_custom_call.1} parent=1 // pred_fallthru
      _
    // Predicated region
    $region10: #{tpu_custom_call.1} parent=1 // pred_check
      _
    $region11: #{tpu_custom_call.1} parent=1 // pred_check_branch
      %28 = sbr.rel (0) target = $region13
    $region12: #{tpu_custom_call.1} parent=1 // pred_region
      _
    $region13: #{tpu_custom_call.1} parent=1 // pred_fallthru
      _
    // Predicated region
    $region14: #{tpu_custom_call.1} parent=1 // pred_check
      _
    $region15: #{tpu_custom_call.1} parent=1 // pred_check_branch
      %30 = sbr.rel (0) target = $region17
    $region16: #{tpu_custom_call.1} parent=1 // pred_region
      _
    $region17: #{tpu_custom_call.1} parent=1 // pred_fallthru
      _
    // Predicated region
    $region18: #{tpu_custom_call.1} parent=1 // pred_check
      _
    $region19: #{tpu_custom_call.1} parent=1 // pred_check_branch
      %32 = sbr.rel (0) target = $region21
    $region20: #{tpu_custom_call.1} parent=1 // pred_region
      _
    $region21: #{tpu_custom_call.1} parent=1 // pred_fallthru
      _
    // Predicated region
    $region22: #{tpu_custom_call.1} parent=1 // pred_check
      _
    $region23: #{tpu_custom_call.1} parent=1 // pred_check_branch
      %34 = sbr.rel (0) target = $region25
    $region24: #{tpu_custom_call.1} parent=1 // pred_region
      _
    $region25: #{tpu_custom_call.1} parent=1 // pred_fallthru
      _
    // Predicated region
    $region26: #{tpu_custom_call.1} parent=1 // pred_check
      _
    $region27: #{tpu_custom_call.1} parent=1 // pred_check_branch
      %36 = sbr.rel (0) target = $region29
    $region28: #{tpu_custom_call.1} parent=1 // pred_region
      _
    $region29: #{tpu_custom_call.1} parent=1 // pred_fallthru
      _
    // Predicated region
    $region30: #{tpu_custom_call.1} parent=1 // pred_check
      _
    $region31: #{tpu_custom_call.1} parent=1 // pred_check_branch
      %38 = sbr.rel (0) target = $region33
    $region32: #{tpu_custom_call.1} parent=1 // pred_region
      %40 = dma.done [#allocation3], 128
    $region33: #{tpu_custom_call.1} parent=1 // pred_fallthru
      _
    %v41 = vld [vmem:[#allocation2] sm:$0xff]
    %v42 = vld [vmem:[%s1] sm:$0xff]
    %v43 = vld [vmem:[%s1 + $0x8] sm:$0xff]
    %v44 = vld [vmem:[%s2] sm:$0x1]
    %v46 = vperm.slane %v44, 0
    %vm48 = vcmask 130048
    %v50 = vsel %vm48, %v41, 0
    %52 = vmatpush.msra.mxu0 0.0
    %53 = vmatpush.msra.mxu0 0.0
    %54 = vmatpush.msra.mxu0 0.0
    %55 = vmatpush.msra.mxu0 0.0
    %56 = vmatpush.msra.mxu0 0.0
    %57 = vmatpush.msra.mxu0 0.0
    %58 = vmatpush.msra.mxu0 0.0
    %59 = vmatpush.msra.mxu0 0.0
    %60 = vmatpush.msra.mxu0 0.0
    %61 = vmatpush.msra.mxu0 0.0
    %62 = vmatpush.msra.mxu0 0.0
    %63 = vmatpush.msra.mxu0 0.0
    %64 = vmatpush.msra.mxu0 0.0
    %65 = vmatpush.msra.mxu0 0.0
    %66 = vmatpush.msra.mxu0 %v43
    %67 = vmatpush.msra.mxu0 %v42
    %68 = vmatmul.f32.gmra.mxu0 %v50
    %v69 = vpop.f32.mrf.mxu0
    %v70 = vadd.f32 %v46, %v69
    %71 = vdwg.mxu0
    %72 = vset.pattern.permute.xlu0 16
    %73 = vperm.xlu0 %72, %v41
    %v74 = vpop.permute.xlu0 %73
    %v76 = vmul.f32 %v74, %v70
    %77 = vset.pattern.permute.xlu0 17
    %78 = vperm.xlu0 %77, %v41
    %v79 = vpop.permute.xlu0 %78
    %v81 = vmul.f32 %v79, %v70
    %83 = vrot.lane.b32.xlu0 %v81, 96
    %v84 = vpop.permute.xlu0 %83
    %v86 = vadd.f32 %v76, %v84
    %87 = vset.pattern.permute.xlu0 18
    %88 = vperm.xlu0 %87, %v41
    %v89 = vpop.permute.xlu0 %88
    %v91 = vmul.f32 %v89, %v70
    %93 = vrot.lane.b32.xlu0 %v91, 64
    %v94 = vpop.permute.xlu0 %93
    %v96 = vadd.f32 %v86, %v94
    %v97 = vmax.f32 %v96, 0.0
    %v98 = vmax.f32 %v70, 0.0
    %100 = vrot.lane.b32.xlu0 %v98, 64
    %v101 = vpop.permute.xlu0 %100
    %vm103 = vcmask 261120
    %v104 = vsel %vm103, %v97, %v101
    %v105 = vld [vmem:[%s3] sm:$0xff]
    %v106 = vld [vmem:[%s3 + $0x8] sm:$0xff]
    %v107 = vld [vmem:[%s3 + $0x10] sm:$0xff]
    %v108 = vld [vmem:[%s3 + $0x18] sm:$0xff]
    %v109 = vld [vmem:[%s3 + $0x20] sm:$0xff]
    %v110 = vld [vmem:[%s3 + $0x28] sm:$0xff]
    %v111 = vld [vmem:[%s3 + $0x30] sm:$0xff]
    %v112 = vld [vmem:[%s3 + $0x38] sm:$0xff]
    %v113 = vld [vmem:[%s4] sm:$0x1]
    %v115 = vperm.slane %v113, 0
    %vm117 = vcmask 523264
    %v119 = vsel %vm117, %v104, 0
    %121 = vmatpush.msra.mxu0 0.0
    %122 = vmatpush.msra.mxu0 0.0
    %123 = vmatpush.msra.mxu0 0.0
    %124 = vmatpush.msra.mxu0 0.0
    %125 = vmatpush.msra.mxu0 0.0
    %126 = vmatpush.msra.mxu0 0.0
    %127 = vmatpush.msra.mxu0 0.0
    %128 = vmatpush.msra.mxu0 0.0
    %129 = vmatpush.msra.mxu0 %v112
    %130 = vmatpush.msra.mxu0 %v111
    %131 = vmatpush.msra.mxu0 %v110
    %132 = vmatpush.msra.mxu0 %v109
    %133 = vmatpush.msra.mxu0 %v108
    %134 = vmatpush.msra.mxu0 %v107
    %135 = vmatpush.msra.mxu0 %v106
    %136 = vmatpush.msra.mxu0 %v105
    %137 = vmatmul.f32.gmra.mxu0 %v119
    %v138 = vpop.f32.mrf.mxu0
    %v139 = vadd.f32 %v115, %v138
    %140 = vdwg.mxu0
    %v141 = vmul.f32 %v74, %v139
    %v142 = vmul.f32 %v79, %v139
    %144 = vrot.lane.b32.xlu0 %v142, 96
    %v145 = vpop.permute.xlu0 %144
    %v147 = vadd.f32 %v141, %v145
    %v148 = vmul.f32 %v89, %v139
    %150 = vrot.lane.b32.xlu0 %v148, 64
    %v151 = vpop.permute.xlu0 %150
    %v153 = vadd.f32 %v147, %v151
    %v154 = vmax.f32 %v153, 0.0
    %v155 = vmax.f32 %v139, 0.0
    %157 = vrot.lane.b32.xlu0 %v155, 64
    %v158 = vpop.permute.xlu0 %157
    %v160 = vsel %vm103, %v154, %v158
    %v161 = vld [vmem:[%s5] sm:$0xff]
    %v162 = vld [vmem:[%s5 + $0x8] sm:$0xff]
    %v163 = vld [vmem:[%s5 + $0x10] sm:$0xff]
    %v164 = vld [vmem:[%s5 + $0x18] sm:$0xff]
    %v165 = vld [vmem:[%s5 + $0x20] sm:$0xff]
    %v166 = vld [vmem:[%s5 + $0x28] sm:$0xff]
    %v167 = vld [vmem:[%s5 + $0x30] sm:$0xff]
    %v168 = vld [vmem:[%s5 + $0x38] sm:$0xff]
    %v169 = vld [vmem:[%s6] sm:$0x1]
    %v171 = vperm.slane %v169, 0
    %v174 = vsel %vm117, %v160, 0
    %176 = vmatpush.msra.mxu0 0.0
    %177 = vmatpush.msra.mxu0 0.0
    %178 = vmatpush.msra.mxu0 0.0
    %179 = vmatpush.msra.mxu0 0.0
    %180 = vmatpush.msra.mxu0 0.0
    %181 = vmatpush.msra.mxu0 0.0
    %182 = vmatpush.msra.mxu0 0.0
    %183 = vmatpush.msra.mxu0 0.0
    %184 = vmatpush.msra.mxu0 %v168
    %185 = vmatpush.msra.mxu0 %v167
    %186 = vmatpush.msra.mxu0 %v166
    %187 = vmatpush.msra.mxu0 %v165
    %188 = vmatpush.msra.mxu0 %v164
    %189 = vmatpush.msra.mxu0 %v163
    %190 = vmatpush.msra.mxu0 %v162
    %191 = vmatpush.msra.mxu0 %v161
    %192 = vmatmul.f32.gmra.mxu0 %v174
    %v193 = vpop.f32.mrf.mxu0
    %v194 = vadd.f32 %v171, %v193
    %195 = vdwg.mxu0
    %v196 = vmul.f32 %v74, %v194
    %v197 = vmul.f32 %v79, %v194
    %199 = vrot.lane.b32.xlu0 %v197, 124
    %v200 = vpop.permute.xlu0 %199
    %v202 = vadd.f32 %v196, %v200
    %v203 = vmul.f32 %v89, %v194
    %205 = vrot.lane.b32.xlu0 %v203, 120
    %v206 = vpop.permute.xlu0 %205
    %v208 = vadd.f32 %v202, %v206
    %vm209 = vcmask 31744
    %v210 = vsel %vm209, %v208, -inf
    %211 = vmax.xlane.f32.xlu0 %v210
    %v212 = vpop.xlane.xlu0 %211
    %v213 = vsub.f32 %v208, %v212
    %v214 = vmul.f32 %v213, 1.442695
    %v215 = vpow.pop %v214
    %v216 = vsel %vm209, %v215, 0.0
    %217 = vadd.xlane.f32.xlu0 %v216
    %v218 = vpop.xlane.xlu0 %217
    %v219 = vlog2.pop %v218
    %v220 = vmul.f32 %v219, 0.6931472
    %v221 = vsub.f32 %v213, %v220
    %v222 = vmul.f32 %v221, 1.442695
    %v223 = vpow.pop %v222
    %v224 = vmul.f32 %v223, %v221
    %v225 = vsel %vm209, %v224, 0.0
    %226 = vadd.xlane.f32.xlu0 %v225
    %v227 = vpop.xlane.xlu0 %226
    %v228 = vsub.f32 0.0, %v227
    %v229 = vlaneseq
    %v230 = vand.u32 %v229, 127
    %v231 = vcvt.s32.f32 %v230
    %232 = vrot.lane.b32.xlu0 %v41, 109
    %v233 = vpop.permute.xlu0 %232
    %v235 = vadd.f32 %v208, %v233
    %v236 = vsel %vm209, %v235, -inf
    %237 = vmax.xlane.f32.xlu0 %v236
    %v238 = vpop.xlane.xlu0 %237
    %vm239 = vcmp.eq.f32.partialorder %v235, %v238
    %v240 = vsel %vm239, %v231, 4.0
    %v241 = vsel %vm209, %v240, inf
    %242 = vmin.xlane.f32.xlu0 %v241
    %v243 = vpop.xlane.xlu0 %242
    %vm244 = vcmp.eq.f32.partialorder %v231, %v243
    %v245 = vsel %vm244, 1, 0
    %v246 = vcvt.s32.f32 %v245
    %v247 = vmul.f32 %v246, %v221
    %v248 = vsel %vm209, %v247, 0.0
    %249 = vadd.xlane.f32.xlu0 %v248
    %v250 = vpop.xlane.xlu0 %249
    %vm251 = vcmp.eq.s32.totalorder %v230, 0
    %v252 = vsel %vm251, %v243, 0.0
    %vm253 = vcmp.eq.s32.totalorder %v230, 1
    %v254 = vsel %vm253, %v250, %v252
    %vm255 = vcmp.eq.s32.totalorder %v230, 2
    %257 = vset.pattern.permute.xlu0 12
    %258 = vperm.xlu0 %257, %v194
    %v259 = vpop.permute.xlu0 %258
    %v261 = vsel %vm255, %v259, %v254
    %vm262 = vcmp.eq.s32.totalorder %v230, 3
    %v263 = vsel %vm262, %v228, %v261
    %vm264 = vcmask 64512
    %265 = vst.msk [vmem:[#allocation5] sm:$0xff] %vm264, %v263
    // Predicated region
    $region34: #{tpu_custom_call.1} parent=1 // pred_check
      _
    $region35: #{tpu_custom_call.1} parent=1 // pred_check_branch
      %267 = sbr.rel (0) target = $region37
    $region36: #{tpu_custom_call.1} parent=1 // pred_region
      %269 = vsyncadd [#allocation4], 0
      %s271 = sshll.u32 [#allocation5], 4
      %s272 = int_to_ptr.vmem [resolvable:$true] %s271
      %s273 = sshll.u32 %s7, 4
      %s274 = int_to_ptr.hbm [resolvable:$true] %s273
      %276 = dma.vmem_to_hbm [thread:$0]  %s272, 128, %s274, [#allocation4]
    $region37: #{tpu_custom_call.1} parent=1 // pred_fallthru
      _
    // Predicated region
    $region38: #{tpu_custom_call.1} parent=1 // pred_check
      _
    $region39: #{tpu_custom_call.1} parent=1 // pred_check_branch
      %278 = sbr.rel (0) target = $region41
    $region40: #{tpu_custom_call.1} parent=1 // pred_region
      %280 = dma.done [#allocation4], 128
    $region41: #{tpu_custom_call.1} parent=1 // pred_fallthru
      _
    %281 = vsyncpa [#allocation3], 1
    %282 = vsyncpa [#allocation4], 1

</llo_original>
